<compile_context>
chip_gen: v5e
topology: v5e:2x2
jax: 0.10.0
libtpu: 0.0.40
codegen_flags: <defaults>
</compile_context>

<pallas_src>
import functools

import jax
import jax.numpy as jnp
import numpy as np
from jax import lax
from jax.experimental import pallas as pl
from jax.experimental.pallas import tpu as pltpu


def _round_up(v, m):
    return (v + m - 1) // m * m


def _time_reduction_kernel(lens_ref, x_ref, wdw_ref, wpw_ref, bpw_ref, o_ref,
                           *, kernel_size, stride, padding, conv_t_out,
                           tile_l, l_pad):
    b = pl.program_id(0)
    l = pl.program_id(1)

    # First padded-input row read by this output tile (tap k adds +k).
    base = pl.multiple_of(l * (tile_l * stride), tile_l * stride)
    in_limit = lens_ref[b] + padding       # first padded index past valid data

    c = x_ref.shape[1]
    acc = jnp.zeros((tile_l, c), jnp.float32)

    # Depthwise strided conv via parity slabs:
    #   parity q slab = rows base+q, base+q+stride, ... (one strided load),
    #   length-masked ONCE, then tap k (k % stride == q) is the static sublane
    #   slice slab[(k-q)//stride : (k-q)//stride + tile_l].
    # The left zero-padding of x (done in the wrapper) implements the conv
    # zero padding; the length mask reproduces masked_fill(mask_pad == 0, 0).
    n_parity = min(stride, kernel_size)
    for q in range(n_parity):
        extra = (kernel_size - 1 - q) // stride
        slab_len = tile_l + extra
        slab = x_ref[pl.ds(base + q, slab_len, stride=stride), :]   # (SL, C)
        slab_row = lax.broadcasted_iota(jnp.int32, (slab_len, 1), 0)
        slab_pos = base + q + slab_row * stride                     # padded idx
        slab = jnp.where(slab_pos < in_limit, slab, 0.0)
        for j in range(extra + 1):
            k = q + j * stride
            w_k = wdw_ref[k:k + 1, :]                               # (1, C)
            acc = acc + slab[j:j + tile_l, :] * w_k

    # Pointwise 1x1 conv on the MXU: (TL, C) @ (C, D_pad) + (1, D_pad).
    # The depthwise bias is already folded into bpw in the wrapper.
    out = jnp.dot(acc.astype(wpw_ref.dtype), wpw_ref[...],
                  preferred_element_type=jnp.float32)
    out = out + bpw_ref[...]

    if conv_t_out < l_pad:
        # Rows past the conv output length are the reference's zero
        # "dummy_pad"; only emitted/executed when it can actually trigger.
        first_dummy_tile = conv_t_out // tile_l
        row = lax.broadcasted_iota(jnp.int32, (tile_l, 1), 0)
        t_out = l * tile_l + row

        @pl.when(l >= first_dummy_tile)
        def _():
            o_ref[...] = jnp.where(t_out < conv_t_out, out, 0.0).astype(o_ref.dtype)

        @pl.when(l < first_dummy_tile)
        def _():
            o_ref[...] = out.astype(o_ref.dtype)
    else:
        o_ref[...] = out.astype(o_ref.dtype)


def time_reduction_layer_1d(xs, xs_lens, mask, mask_pad, params,
                            kernel_size=5, stride=2, tile_l=None,
                            use_bf16_matmul=False):
    """xs: (B, T, C) f32, xs_lens: (B,) int, mask: (B, T, T) bool,
    mask_pad: (B, 1, T) bool.  Returns (xs_out, xs_lens, mask, mask_pad)."""
    B, T, C = xs.shape
    out_dim = params["pw_w"].shape[0]
    padding = max(0, kernel_size - stride)
    conv_t_out = (T + 2 * padding - kernel_size) // stride + 1
    L = -(-T // stride)                    # == mask_pad[:, :, ::stride].shape[-1]

    # ---- tiling / padding choices (8-aligned L tiles, lane-dense output) ----
    if tile_l is None:
        # 256 fills the 256-wide MXU on v6e/v7x and halves grid-step overhead.
        tile_l = min(256, _round_up(L, 8))
    tile_l = _round_up(tile_l, 8)
    n_l = -(-L // tile_l)
    l_pad = n_l * tile_l
    d_pad = _round_up(out_dim, 128)
    t_pad = _round_up(l_pad * stride + padding, 8)

    # Zero-pad time: `padding` zeros in front implement the conv's zero
    # padding; right padding keeps every strided slab read in-bounds.
    x_p = jnp.pad(xs, ((0, 0), (padding, t_pad - padding - T), (0, 0)))

    # Kernel-friendly parameter layouts (zero-pad out_dim to a lane multiple).
    wdw = params["dw_w"][:, 0, :].T                                 # (K, C)
    pw_w2d = params["pw_w"][:, :, 0]                                # (D, C)
    wpw = jnp.pad(pw_w2d.T, ((0, 0), (0, d_pad - out_dim)))         # (C, D_pad)
    # Fold the depthwise bias through the (linear) pointwise conv.
    bpw_fused = (jnp.einsum("c,dc->d", params["dw_b"], pw_w2d,
                            precision=lax.Precision.HIGHEST)
                 + params["pw_b"])
    bpw = jnp.pad(bpw_fused[None, :], ((0, 0), (0, d_pad - out_dim)))
    if use_bf16_matmul:
        wpw = wpw.astype(jnp.bfloat16)      # numerics-changing; off by default

    kern = functools.partial(_time_reduction_kernel, kernel_size=kernel_size,
                             stride=stride, padding=padding,
                             conv_t_out=conv_t_out, tile_l=tile_l, l_pad=l_pad)

    # VMEM budget: resident x block (double-buffered), out tiles, params.
    vmem_est = 4 * (2 * t_pad * C
                    + 2 * tile_l * d_pad
                    + 2 * (_round_up(kernel_size, 8) * C
                           + C * d_pad + 8 * d_pad))
    vmem_limit = int(min(64 << 20, max(2 * vmem_est, 32 << 20)))

    out_padded = pl.pallas_call(
        kern,
        out_shape=jax.ShapeDtypeStruct((B, l_pad, d_pad), jnp.float32),
        grid_spec=pltpu.PrefetchScalarGridSpec(
            num_scalar_prefetch=1,
            grid=(B, n_l),
            in_specs=[
                # x: whole (padded) time axis per batch element; index_map is
                # constant over the L axis so it is fetched once per batch.
                pl.BlockSpec((pl.Squeezed(), t_pad, C),
                             lambda b, l, lens: (b, 0, 0)),
                pl.BlockSpec((kernel_size, C), lambda b, l, lens: (0, 0)),
                pl.BlockSpec((C, d_pad), lambda b, l, lens: (0, 0)),
                pl.BlockSpec((1, d_pad), lambda b, l, lens: (0, 0)),
            ],
            out_specs=pl.BlockSpec((pl.Squeezed(), tile_l, d_pad),
                                   lambda b, l, lens: (b, l, 0)),
        ),
        compiler_params=pltpu.CompilerParams(
            dimension_semantics=("parallel", "parallel"),
            vmem_limit_bytes=vmem_limit),
    )(xs_lens.astype(jnp.int32), x_p, wdw, wpw, bpw)

    xs_out = out_padded[:, :L, :out_dim]

    new_mask = mask[:, ::stride, ::stride]
    new_mask_pad = mask_pad[:, :, ::stride]
    # NOTE: the PyTorch module hardcodes the stride-2 length update
    # (torch.div(xs_lens + 1, 2, rounding_mode='trunc')); kept verbatim.
    new_lens = (xs_lens + 1) // 2
    return xs_out, new_lens, new_mask, new_mask_pad


def reference(xs, xs_lens, mask, mask_pad, params, kernel_size=5, stride=2):
    """Plain-JAX reference mirroring the PyTorch forward (f32, highest prec)."""
    padding = max(0, kernel_size - stride)
    x = xs.transpose(0, 2, 1)                              # (B, C, T)
    x = jnp.where(mask_pad, x, 0.0)
    y = lax.conv_general_dilated(
        x, params["dw_w"], window_strides=(stride,),
        padding=[(padding, padding)],
        feature_group_count=x.shape[1],
        dimension_numbers=("NCH", "OIH", "NCH"),
        precision=lax.Precision.HIGHEST)
    y = y + params["dw_b"][None, :, None]
    z = jnp.einsum("oc,bct->bot", params["pw_w"][:, :, 0], y,
                   precision=lax.Precision.HIGHEST)
    z = z + params["pw_b"][None, :, None]
    z = z.transpose(0, 2, 1)                               # (B, T_out, D)
    B, Tn, D = z.shape
    L = mask_pad[:, :, ::stride].shape[-1]
    if L - Tn < 0:
        z = z[:, :L - Tn, :]
    else:
        z = jnp.concatenate([z, jnp.zeros((B, L - Tn, D), z.dtype)], axis=1)
    return (z, (xs_lens + 1) // 2,
            mask[:, ::stride, ::stride], mask_pad[:, :, ::stride])


def _run_case(key, B, T, C, D, K, stride, lens, tile_l):
    k0, k1, k2, k3, k4 = jax.random.split(key, 5)
    dw_max = K ** -0.5
    pw_max = C ** -0.5
    params = {
        "dw_w": jax.random.uniform(k0, (C, 1, K), jnp.float32, -dw_max, dw_max),
        "dw_b": jax.random.uniform(k1, (C,), jnp.float32, -dw_max, dw_max),
        "pw_w": jax.random.uniform(k2, (D, C, 1), jnp.float32, -pw_max, pw_max),
        "pw_b": jax.random.uniform(k3, (D,), jnp.float32, -pw_max, pw_max),
    }
    xs = jax.random.normal(k4, (B, T, C), jnp.float32)
    xs_lens = jnp.asarray(lens, jnp.int32)
    t_idx = jnp.arange(T)
    mask_pad = t_idx[None, None, :] < xs_lens[:, None, None]     # (B, 1, T)
    mask = mask_pad & mask_pad.transpose(0, 2, 1)                # (B, T, T)

    out, out_lens, out_mask, out_mask_pad = time_reduction_layer_1d(
        xs, xs_lens, mask, mask_pad, params, K, stride, tile_l=tile_l)
    out = jax.block_until_ready(out)

    ref_out, ref_lens, ref_mask, ref_mask_pad = reference(
        xs, xs_lens, mask, mask_pad, params, K, stride)

    np.testing.assert_allclose(np.asarray(out), np.asarray(ref_out),
                               atol=1e-5, rtol=1e-5)
    L = -(-T // stride)
    assert out.shape == (B, L, D)
    assert bool(jnp.all(out_lens == ref_lens))
    assert bool(jnp.all(out_mask == ref_mask))
    assert bool(jnp.all(out_mask_pad == ref_mask_pad))


if __name__ == "__main__":
    key = jax.random.PRNGKey(0)
    k_a, k_b = jax.random.split(key)
    # Case A: squeezeformer defaults with multiple L tiles -- exercises the L
    # grid axis, parity-slab strided loads and per-batch length masking.
    _run_case(k_a, B=2, T=48, C=8, D=16, K=5, stride=2, lens=[48, 33], tile_l=8)
    # Case B: kernel_size <= stride (zero conv padding) and odd T, so the
    # reference appends a zero "dummy_pad" row; auto tile size (single tile).
    _run_case(k_b, B=2, T=45, C=8, D=16, K=2, stride=2, lens=[45, 17], tile_l=None)
    print("KERNEL_OK")
</pallas_src>

<mosaic_0001>
module attributes {stable_mosaic.version = 11 : i64} {
  func.func @_time_reduction_kernel(%arg0: i32, %arg1: i32, %arg2: memref<2xi32, #tpu.memory_space<smem>>, %arg3: memref<1x56x8xf32, #tpu.memory_space<vmem>>, %arg4: memref<5x8xf32, #tpu.memory_space<vmem>>, %arg5: memref<8x128xf32, #tpu.memory_space<vmem>>, %arg6: memref<1x128xf32, #tpu.memory_space<vmem>>, %arg7: memref<1x8x128xf32, #tpu.memory_space<vmem>>) attributes {dimension_semantics = [#tpu.dimension_semantics<parallel>, #tpu.dimension_semantics<parallel>], iteration_bounds = array<i64: 2, 3>, scalar_prefetch = 1 : i64, scratch_operands = 0 : i64, tpu.core_type = #tpu.core_type<tc>, window_params = [{transform_indices = @transform_0, window_bounds = array<i64: 1, 56, 8>}, {pipeline_mode = #tpu.pipeline_mode<synchronous>, transform_indices = @transform_1, window_bounds = array<i64: 5, 8>}, {pipeline_mode = #tpu.pipeline_mode<synchronous>, transform_indices = @transform_2, window_bounds = array<i64: 8, 128>}, {pipeline_mode = #tpu.pipeline_mode<synchronous>, transform_indices = @transform_3, window_bounds = array<i64: 1, 128>}, {transform_indices = @transform_4, window_bounds = array<i64: 1, 8, 128>}]} {
    %c16_i32 = arith.constant 16 : i32
    %0 = arith.muli %arg1, %c16_i32 : i32
    %1 = tpu.assume_multiple %0, 16 : i32
    %2 = arith.index_cast %arg0 : i32 to index
    %3 = memref.load %arg2[%2] : memref<2xi32, #tpu.memory_space<smem>>
    %c3_i32 = arith.constant 3 : i32
    %4 = arith.addi %3, %c3_i32 : i32
    %cst = arith.constant 0.000000e+00 : f32
    %5 = vector.broadcast %cst : f32 to vector<8x8xf32>
    %c0_i32 = arith.constant 0 : i32
    %6 = arith.addi %1, %c0_i32 : i32
    %c0 = arith.constant 0 : index
    %7 = arith.index_cast %6 : i32 to index
    %c0_0 = arith.constant 0 : index
    %8 = tpu.strided_load %arg3[%c0, %7, %c0_0] {strides = array<i32: 1, 2, 1>} : memref<1x56x8xf32, #tpu.memory_space<vmem>>, vector<1x10x8xf32>
    %9 = vector.shape_cast %8 : vector<1x10x8xf32> to vector<10x8xf32>
    %10 = tpu.iota {dimensions = array<i32: 0>} : vector<10x1xi32>
    %c0_i32_1 = arith.constant 0 : i32
    %11 = arith.addi %1, %c0_i32_1 : i32
    %c2_i32 = arith.constant 2 : i32
    %12 = vector.broadcast %c2_i32 : i32 to vector<10x1xi32>
    %13 = arith.muli %10, %12 : vector<10x1xi32>
    %14 = vector.broadcast %11 : i32 to vector<10x1xi32>
    %15 = arith.addi %14, %13 : vector<10x1xi32>
    %16 = vector.broadcast %4 : i32 to vector<10x1xi32>
    %17 = arith.cmpi slt, %15, %16 : vector<10x1xi32>
    %cst_2 = arith.constant 0.000000e+00 : f32
    %18 = vector.shape_cast %17 : vector<10x1xi1> to vector<10x1xi1>
    %19 = vector.broadcast %18 : vector<10x1xi1> to vector<10x8xi1>
    %20 = vector.broadcast %cst_2 : f32 to vector<10x8xf32>
    %21 = arith.select %19, %9, %20 : vector<10x8xi1>, vector<10x8xf32>
    %c0_3 = arith.constant 0 : index
    %c0_4 = arith.constant 0 : index
    %22 = vector.load %arg4[%c0_3, %c0_4] : memref<5x8xf32, #tpu.memory_space<vmem>>, vector<1x8xf32>
    %23 = vector.extract_strided_slice %21 {offsets = [0, 0], sizes = [8, 8], strides = [1, 1]} : vector<10x8xf32> to vector<8x8xf32>
    %24 = vector.broadcast %22 : vector<1x8xf32> to vector<8x8xf32>
    %25 = arith.mulf %23, %24 : vector<8x8xf32>
    %26 = arith.addf %5, %25 : vector<8x8xf32>
    %c2 = arith.constant 2 : index
    %c0_5 = arith.constant 0 : index
    %27 = vector.load %arg4[%c2, %c0_5] : memref<5x8xf32, #tpu.memory_space<vmem>>, vector<1x8xf32>
    %28 = vector.extract_strided_slice %21 {offsets = [1, 0], sizes = [8, 8], strides = [1, 1]} : vector<10x8xf32> to vector<8x8xf32>
    %29 = vector.broadcast %27 : vector<1x8xf32> to vector<8x8xf32>
    %30 = arith.mulf %28, %29 : vector<8x8xf32>
    %31 = arith.addf %26, %30 : vector<8x8xf32>
    %c4 = arith.constant 4 : index
    %c0_6 = arith.constant 0 : index
    %32 = vector.load %arg4[%c4, %c0_6] : memref<5x8xf32, #tpu.memory_space<vmem>>, vector<1x8xf32>
    %33 = vector.extract_strided_slice %21 {offsets = [2, 0], sizes = [8, 8], strides = [1, 1]} : vector<10x8xf32> to vector<8x8xf32>
    %34 = vector.broadcast %32 : vector<1x8xf32> to vector<8x8xf32>
    %35 = arith.mulf %33, %34 : vector<8x8xf32>
    %36 = arith.addf %31, %35 : vector<8x8xf32>
    %c1_i32 = arith.constant 1 : i32
    %37 = arith.addi %1, %c1_i32 : i32
    %c0_7 = arith.constant 0 : index
    %38 = arith.index_cast %37 : i32 to index
    %c0_8 = arith.constant 0 : index
    %39 = tpu.strided_load %arg3[%c0_7, %38, %c0_8] {strides = array<i32: 1, 2, 1>} : memref<1x56x8xf32, #tpu.memory_space<vmem>>, vector<1x9x8xf32>
    %40 = vector.shape_cast %39 : vector<1x9x8xf32> to vector<9x8xf32>
    %41 = tpu.iota {dimensions = array<i32: 0>} : vector<9x1xi32>
    %c1_i32_9 = arith.constant 1 : i32
    %42 = arith.addi %1, %c1_i32_9 : i32
    %c2_i32_10 = arith.constant 2 : i32
    %43 = vector.broadcast %c2_i32_10 : i32 to vector<9x1xi32>
    %44 = arith.muli %41, %43 : vector<9x1xi32>
    %45 = vector.broadcast %42 : i32 to vector<9x1xi32>
    %46 = arith.addi %45, %44 : vector<9x1xi32>
    %47 = vector.broadcast %4 : i32 to vector<9x1xi32>
    %48 = arith.cmpi slt, %46, %47 : vector<9x1xi32>
    %cst_11 = arith.constant 0.000000e+00 : f32
    %49 = vector.shape_cast %48 : vector<9x1xi1> to vector<9x1xi1>
    %50 = vector.broadcast %49 : vector<9x1xi1> to vector<9x8xi1>
    %51 = vector.broadcast %cst_11 : f32 to vector<9x8xf32>
    %52 = arith.select %50, %40, %51 : vector<9x8xi1>, vector<9x8xf32>
    %c1 = arith.constant 1 : index
    %c0_12 = arith.constant 0 : index
    %53 = vector.load %arg4[%c1, %c0_12] : memref<5x8xf32, #tpu.memory_space<vmem>>, vector<1x8xf32>
    %54 = vector.extract_strided_slice %52 {offsets = [0, 0], sizes = [8, 8], strides = [1, 1]} : vector<9x8xf32> to vector<8x8xf32>
    %55 = vector.broadcast %53 : vector<1x8xf32> to vector<8x8xf32>
    %56 = arith.mulf %54, %55 : vector<8x8xf32>
    %57 = arith.addf %36, %56 : vector<8x8xf32>
    %c3 = arith.constant 3 : index
    %c0_13 = arith.constant 0 : index
    %58 = vector.load %arg4[%c3, %c0_13] : memref<5x8xf32, #tpu.memory_space<vmem>>, vector<1x8xf32>
    %59 = vector.extract_strided_slice %52 {offsets = [1, 0], sizes = [8, 8], strides = [1, 1]} : vector<9x8xf32> to vector<8x8xf32>
    %60 = vector.broadcast %58 : vector<1x8xf32> to vector<8x8xf32>
    %61 = arith.mulf %59, %60 : vector<8x8xf32>
    %62 = arith.addf %57, %61 : vector<8x8xf32>
    %c0_14 = arith.constant 0 : index
    %c0_15 = arith.constant 0 : index
    %63 = vector.load %arg5[%c0_14, %c0_15] : memref<8x128xf32, #tpu.memory_space<vmem>>, vector<8x128xf32>
    %cst_16 = arith.constant dense<0.000000e+00> : vector<8x128xf32>
    %64 = tpu.matmul %62, %63, %cst_16 {dimension_numbers = #tpu.dot_dimension_numbers<[1], [0], [0], [1], [0, 0, 1, 1], [], []>} : vector<8x8xf32>, vector<8x128xf32>, vector<8x128xf32> -> vector<8x128xf32>
    %c0_17 = arith.constant 0 : index
    %c0_18 = arith.constant 0 : index
    %65 = vector.load %arg6[%c0_17, %c0_18] : memref<1x128xf32, #tpu.memory_space<vmem>>, vector<1x128xf32>
    %66 = vector.broadcast %65 : vector<1x128xf32> to vector<8x128xf32>
    %67 = arith.addf %64, %66 : vector<8x128xf32>
    %c0_19 = arith.constant 0 : index
    %c0_20 = arith.constant 0 : index
    %c0_21 = arith.constant 0 : index
    %68 = vector.load %arg7[%c0_19, %c0_20, %c0_21] : memref<1x8x128xf32, #tpu.memory_space<vmem>>, vector<1x8x128xf32>
    %69 = vector.shape_cast %68 : vector<1x8x128xf32> to vector<8x128xf32>
    %70 = vector.shape_cast %67 : vector<8x128xf32> to vector<1x8x128xf32>
    tpu.vector_store %arg7[%c0_19, %c0_20, %c0_21], %70 {strides = array<i32>} : memref<1x8x128xf32, #tpu.memory_space<vmem>>, vector<1x8x128xf32>,
    return
  }
  func.func @transform_0(%arg0: i32, %arg1: i32, %arg2: memref<2xi32, #tpu.memory_space<smem>>) -> (i32, i32, i32) {
    %c0_i32 = arith.constant 0 : i32
    %c0_i32_0 = arith.constant 0 : i32
    %c0_i32_1 = arith.constant 0 : i32
    return %arg0, %c0_i32, %c0_i32_0 : i32, i32, i32
  }
  func.func @transform_1(%arg0: i32, %arg1: i32, %arg2: memref<2xi32, #tpu.memory_space<smem>>) -> (i32, i32) {
    %c0_i32 = arith.constant 0 : i32
    %c0_i32_0 = arith.constant 0 : i32
    %c0_i32_1 = arith.constant 0 : i32
    return %c0_i32, %c0_i32_0 : i32, i32
  }
  func.func @transform_2(%arg0: i32, %arg1: i32, %arg2: memref<2xi32, #tpu.memory_space<smem>>) -> (i32, i32) {
    %c0_i32 = arith.constant 0 : i32
    %c0_i32_0 = arith.constant 0 : i32
    %c0_i32_1 = arith.constant 0 : i32
    return %c0_i32, %c0_i32_0 : i32, i32
  }
  func.func @transform_3(%arg0: i32, %arg1: i32, %arg2: memref<2xi32, #tpu.memory_space<smem>>) -> (i32, i32) {
    %c0_i32 = arith.constant 0 : i32
    %c0_i32_0 = arith.constant 0 : i32
    %c0_i32_1 = arith.constant 0 : i32
    return %c0_i32, %c0_i32_0 : i32, i32
  }
  func.func @transform_4(%arg0: i32, %arg1: i32, %arg2: memref<2xi32, #tpu.memory_space<smem>>) -> (i32, i32, i32) {
    %c0_i32 = arith.constant 0 : i32
    %c0_i32_0 = arith.constant 0 : i32
    return %arg0, %arg1, %c0_i32 : i32, i32, i32
  }
}

</mosaic_0001>

<llo_original>
// kernel: tpu_custom_call.1
$region0: #{tpu_custom_call.1}
  #allocation0 [shape = 'u32[]', space=smem, size = 0x4, offset = 0x4, fixed_abs, tag = 'smem constant byte address 0x4 - core index']
  #allocation1 [shape = 'u32[72,128]{1,0:T(1,128)}', space=vmem, size = 0x9000, scoped, tag = 'internal scratch']
  #allocation2 [shape = 's32[1]{0}', space=sflag, size = 0x4, scoped, tag = 'scoped memory for tpu_custom_call.1']
  #allocation3 [shape = 'u8[512]{0}', space=smem, size = 0x200, scoped, tag = 'prefetched SMEM operand 0']
  %s0 = inlined_call_operand.vmem [shape: s32[2], index: 0, kind: input, shape index: {}]
  %s1 = inlined_call_operand.vmem [shape: f32[2,56,8], index: 1, kind: input, shape index: {}]
  %s2 = inlined_call_operand.vmem [shape: f32[5,8], index: 2, kind: input, shape index: {}]
  %s3 = inlined_call_operand.vmem [shape: f32[8,128], index: 3, kind: input, shape index: {}]
  %s4 = inlined_call_operand.vmem [shape: f32[1,128], index: 4, kind: input, shape index: {}]
  %s5 = inlined_call_operand.hbm [shape: f32[2,24,128], index: 5, kind: output, shape index: {}]
  %s6 = sld [smem:[#allocation0]]
  $region49: #{tpu_custom_call.1} parent=0
    _
  %s8 = ssub.s32 1, %s6
  %s9 = scalar_select 0, %s8, %s6
  %s11 = sshll.u32 %s0, 4
  %s12 = int_to_ptr.vmem [resolvable:$true] %s11
  %14 = dma.vmem_to_smem %s12, 16, [#allocation3], [#allocation2]
  %16 = dma.done [#allocation2], 16
  %17 = sfence
  $region1: #{tpu_custom_call.1} parent=0
    #allocation4 [shape = 'u8[8192]{0}', space=vmem, size = 0x2000, scoped, tag = 'output window, operand 0']
    #allocation5 [shape = 's32[2]{0}', space=sflag, size = 0x8, scoped, tag = 'scoped memory for tpu_custom_call.1']
    %18 = vsyncpa [#allocation5], 0
    %s19 = scalar_lea.sflag [#allocation5], 1
    %20 = vsyncpa %s19, 0
    loop: start=0, step=1, limit=8
    $region2: #{tpu_custom_call.1} parent=1 // loop_pre_header
      _
    $region3: #{tpu_custom_call.1} parent=1 // loop_header
      %s22 = sphi 0, %s26
      %p23 = scmp.ge.s32.totalorder %s22, 8
      %s29 = sphi 0, %s41
      %s30 = sphi 0, %s37
      %s31 = sphi 0, %s29
      %s32 = sphi 0, %s30
      %s33 = sphi 0, %s31
      %s34 = sphi 0, %s32
      %s44 = sphi 0, %s46
      %s47 = sphi 0, %s44
      %s48 = sphi 0, %s47
      %s64 = sphi 0, %s48
      %s68 = sphi 0, %s68
      %s70 = sphi 0, %s68
      %s71 = sphi 0, %s70
      %s85 = sphi 0, %s71
      %s89 = sphi 0, %s89
      %s91 = sphi 0, %s89
      %s92 = sphi 0, %s91
      %s106 = sphi 0, %s92
      %s110 = sphi 0, %s110
      %s112 = sphi 0, %s110
      %s113 = sphi 0, %s112
      %s127 = sphi 0, %s113
      %s135 = sphi 0, %s137
      %s138 = sphi 0, %s135
      %s139 = sphi 0, %s138
      %s155 = sphi 0, %s139
    $region4: #{tpu_custom_call.1} parent=1 // loop_header_branch
      %25 = sbr.rel (%p23) target = $region8
    $region5: #{tpu_custom_call.1} parent=1 // loop_body
      %s27 = ssub.s32 %s22, 1
      %s28 = ssub.s32 %s22, 2
      %s35 = sadd.s32 1, %s30
      %p36 = scmp.ge.s32.totalorder %s35, 3
      %s37 = scalar_select %p36, 0, %s35
      %s38 = sadd.s32 1, %s29
      %s39 = scalar_select %p36, %s38, %s29
      %p40 = scmp.ge.s32.totalorder %s39, 2
      %s41 = scalar_select %p40, 0, %s39
      %s42 = ssub.s32 %s29, %s41
      %p43 = scmp.eq.s32.totalorder %s42, 0
      %s45 = sadd.s32 %s44, 1
      %s46 = scalar_select %p43, %s44, %s45
      %p49 = pneg %p43
      %p50 = scmp.eq.s32.totalorder %s22, 5
      %p51 = por %p49, %p50
      %p52 = scmp.ne.s32.totalorder %s44, %s47
      %p53 = scmp.eq.s32.totalorder %s22, 0
      %p54 = por %p52, %p53
      %p55 = scmp.ne.s32.totalorder %s44, %s47
      %p56 = scmp.eq.s32.totalorder %s27, 5
      %p57 = por %p55, %p56
      %p58 = scmp.ne.s32.totalorder %s47, %s48
      %p59 = scmp.eq.s32.totalorder %s27, 0
      %p60 = por %p58, %p59
      %p61 = scmp.ne.s32.totalorder %s47, %s48
      %p62 = scmp.eq.s32.totalorder %s28, 5
      %p63 = por %p61, %p62
      %p65 = scmp.ne.s32.totalorder %s48, %s64
      %p66 = scmp.eq.s32.totalorder %s28, 0
      %p67 = por %p65, %p66
      %s69 = sadd.s32 %s68, 1
      %p72 = scmp.eq.s32.totalorder %s22, 5
      %p73 = scmp.ne.s32.totalorder %s68, %s70
      %p74 = scmp.eq.s32.totalorder %s22, 0
      %p75 = por %p73, %p74
      %p76 = scmp.ne.s32.totalorder %s68, %s70
      %p77 = scmp.eq.s32.totalorder %s27, 5
      %p78 = por %p76, %p77
      %p79 = scmp.ne.s32.totalorder %s70, %s71
      %p80 = scmp.eq.s32.totalorder %s27, 0
      %p81 = por %p79, %p80
      %p82 = scmp.ne.s32.totalorder %s70, %s71
      %p83 = scmp.eq.s32.totalorder %s28, 5
      %p84 = por %p82, %p83
      %p86 = scmp.ne.s32.totalorder %s71, %s85
      %p87 = scmp.eq.s32.totalorder %s28, 0
      %p88 = por %p86, %p87
      %s90 = sadd.s32 %s89, 1
      %p93 = scmp.eq.s32.totalorder %s22, 5
      %p94 = scmp.ne.s32.totalorder %s89, %s91
      %p95 = scmp.eq.s32.totalorder %s22, 0
      %p96 = por %p94, %p95
      %p97 = scmp.ne.s32.totalorder %s89, %s91
      %p98 = scmp.eq.s32.totalorder %s27, 5
      %p99 = por %p97, %p98
      %p100 = scmp.ne.s32.totalorder %s91, %s92
      %p101 = scmp.eq.s32.totalorder %s27, 0
      %p102 = por %p100, %p101
      %p103 = scmp.ne.s32.totalorder %s91, %s92
      %p104 = scmp.eq.s32.totalorder %s28, 5
      %p105 = por %p103, %p104
      %p107 = scmp.ne.s32.totalorder %s92, %s106
      %p108 = scmp.eq.s32.totalorder %s28, 0
      %p109 = por %p107, %p108
      %s111 = sadd.s32 %s110, 1
      %p114 = scmp.eq.s32.totalorder %s22, 5
      %p115 = scmp.ne.s32.totalorder %s110, %s112
      %p116 = scmp.eq.s32.totalorder %s22, 0
      %p117 = por %p115, %p116
      %p118 = scmp.ne.s32.totalorder %s110, %s112
      %p119 = scmp.eq.s32.totalorder %s27, 5
      %p120 = por %p118, %p119
      %p121 = scmp.ne.s32.totalorder %s112, %s113
      %p122 = scmp.eq.s32.totalorder %s27, 0
      %p123 = por %p121, %p122
      %p124 = scmp.ne.s32.totalorder %s112, %s113
      %p125 = scmp.eq.s32.totalorder %s28, 5
      %p126 = por %p124, %p125
      %p128 = scmp.ne.s32.totalorder %s113, %s127
      %p129 = scmp.eq.s32.totalorder %s28, 0
      %p130 = por %p128, %p129
      %s131 = ssub.s32 %s29, %s41
      %s132 = ssub.s32 %s30, %s37
      %s133 = sor.u32 %s131, %s132
      %p134 = scmp.eq.s32.totalorder %s133, 0
      %s136 = sadd.s32 %s135, 1
      %s137 = scalar_select %p134, %s135, %s136
      %p140 = pneg %p134
      %p141 = scmp.eq.s32.totalorder %s22, 5
      %p142 = por %p140, %p141
      %p143 = scmp.ne.s32.totalorder %s135, %s138
      %p144 = scmp.eq.s32.totalorder %s22, 0
      %p145 = por %p143, %p144
      %p146 = scmp.ne.s32.totalorder %s135, %s138
      %p147 = scmp.eq.s32.totalorder %s27, 5
      %p148 = por %p146, %p147
      %p149 = scmp.ne.s32.totalorder %s138, %s139
      %p150 = scmp.eq.s32.totalorder %s27, 0
      %p151 = por %p149, %p150
      %p152 = scmp.ne.s32.totalorder %s138, %s139
      %p153 = scmp.eq.s32.totalorder %s28, 5
      %p154 = por %p152, %p153
      %p156 = scmp.ne.s32.totalorder %s139, %s155
      %p157 = scmp.eq.s32.totalorder %s28, 0
      %p158 = por %p156, %p157
      %p159 = scmp.le.s32.totalorder 1, %s22
      %p160 = scmp.lt.s32.totalorder %s22, 7
      %p161 = pnand %p159, %p160
      %p162 = pneg %p161
      // Predicated region
      $region9: #{tpu_custom_call.1} parent=5 // pred_check
        _
      $region10: #{tpu_custom_call.1} parent=5 // pred_check_branch
        %164 = sbr.rel (%p161) target = $region12
      $region11: #{tpu_custom_call.1} parent=5 // pred_region
        %s165 = ssub.s32 %s22, 1
        // Predicated region
        $region13: #{tpu_custom_call.1} parent=11 // pred_check
          %p166 = pneg %p81
        $region14: #{tpu_custom_call.1} parent=11 // pred_check_branch
          %168 = sbr.rel (%p166) target = $region16
        $region15: #{tpu_custom_call.1} parent=11 // pred_region
          _
        $region16: #{tpu_custom_call.1} parent=11 // pred_fallthru
          _
        // Predicated region
        $region17: #{tpu_custom_call.1} parent=11 // pred_check
          %p169 = pneg %p102
        $region18: #{tpu_custom_call.1} parent=11 // pred_check_branch
          %171 = sbr.rel (%p169) target = $region20
        $region19: #{tpu_custom_call.1} parent=11 // pred_region
          _
        $region20: #{tpu_custom_call.1} parent=11 // pred_fallthru
          _
        // Predicated region
        $region21: #{tpu_custom_call.1} parent=11 // pred_check
          %p172 = pneg %p123
        $region22: #{tpu_custom_call.1} parent=11 // pred_check_branch
          %174 = sbr.rel (%p172) target = $region24
        $region23: #{tpu_custom_call.1} parent=11 // pred_region
          _
        $region24: #{tpu_custom_call.1} parent=11 // pred_fallthru
          _
      $region12: #{tpu_custom_call.1} parent=5 // pred_fallthru
        _
      %p175 = scmp.lt.s32.totalorder %s22, 6
      // Predicated region
      $region25: #{tpu_custom_call.1} parent=5 // pred_check
        %p176 = pneg %p175
      $region26: #{tpu_custom_call.1} parent=5 // pred_check_branch
        %178 = sbr.rel (%p176) target = $region28
      $region27: #{tpu_custom_call.1} parent=5 // pred_region
        // Predicated region
        $region29: #{tpu_custom_call.1} parent=27 // pred_check
          %p179 = pneg %p54
        $region30: #{tpu_custom_call.1} parent=27 // pred_check_branch
          %181 = sbr.rel (%p179) target = $region32
        $region31: #{tpu_custom_call.1} parent=27 // pred_region
          %p182 = scmp.lt.s32.totalorder %s29, 1
          %s183 = scalar_select %p182, %s29, 1
          %s184 = smul.addr %s183, 7
          %s185 = smul.addr %s184, 8
          %s186 = scalar_lea.vmem %s1, %s185
        $region32: #{tpu_custom_call.1} parent=27 // pred_fallthru
          _
      $region28: #{tpu_custom_call.1} parent=5 // pred_fallthru
        _
      %p187 = scmp.le.s32.totalorder 1, %s22
      %p188 = scmp.lt.s32.totalorder %s22, 7
      %p189 = pnand %p187, %p188
      %p190 = pneg %p189
      // Predicated region
      $region33: #{tpu_custom_call.1} parent=5 // pred_check
        _
      $region34: #{tpu_custom_call.1} parent=5 // pred_check_branch
        %192 = sbr.rel (%p189) target = $region36
      $region35: #{tpu_custom_call.1} parent=5 // pred_region
        %s193 = ssub.s32 %s22, 1
        %p194 = scmp.lt.s32.totalorder %s31, 1
        %s195 = scalar_select %p194, %s31, 1
        %s196 = smul.addr %s195, 7
        %s197 = smul.addr %s196, 8
        %s198 = scalar_lea.vmem %s1, %s197
        %p199 = pneg %p60
        %p200 = pneg %p57
        %p201 = pneg %p81
        %p202 = pneg %p78
        %p203 = pneg %p102
        %p204 = pneg %p99
        %p205 = pneg %p123
        %p206 = pneg %p120
        %p207 = pneg %p151
        %p208 = pneg %p148
        %s209 = sand.u32 %s138, 1
        %s210 = scalar_lea.sflag [#allocation5], %s209
        %s211 = sand.u32 %s138, 1
        %s212 = smul.addr %s211, 8
        %s213 = scalar_lea.vmem [#allocation4], %s212
        %p214 = scmp.lt.s32.totalorder %s31, 1
        %s215 = scalar_select %p214, %s31, 1
        %s216 = smul.addr %s215, 7
        %s217 = smul.addr %s216, 8
        %s218 = scalar_lea.vmem %s1, %s217
        %s219 = smul.u32 %s32, 16
        %s220 = sld [smem:[#allocation3 + %s31]]
        %s221 = sadd.s32 %s220, 3
        %s222 = scalar_lea.vmem %s218, %s219
        %v223 = vld [vmem:[%s222] ss:$2 sm:$0xff]
        %s224 = scalar_lea.vmem %s222, 16
        %v225 = vld [vmem:[%s224] ss:$2 sm:$0x3]
        %v226 = vlaneseq
        %v227 = vshrl.u32 %v226, 7
        %v228 = vadd.s32 %v227, 8
        %v229 = vmul.u32 %v227, 2
        %v230 = vmul.u32 %v228, 2
        %v231 = vstv %s219
        %v232 = vadd.s32 %v231, %v229
        %v233 = vadd.s32 %v231, %v230
        %v234 = vstv %s221
        %vm235 = vcmp.lt.s32.totalorder %v232, %v234
        %vm236 = vcmp.lt.s32.totalorder %v233, %v234
        %v237 = vsel %vm235, 1, 0
        %v238 = vsel %vm236, 1, 0
        %vm239 = vcmp.eq.s32.totalorder %v237, 1
        %vm240 = vcmp.eq.s32.totalorder %v238, 1
        %v241 = vsel %vm239, %v223, 0.0
        %v242 = vsel %vm240, %v225, 0.0
        %v243 = vld [vmem:[%s2] sm:$0x1]
        %v244 = vperm.slane %v243, 0
        %v245 = vmul.f32 %v241, %v244
        %v246 = vadd.f32 %v245, 0.0
        %v247 = vld [vmem:[%s2 + $0x2] sm:$0x1]
        %v248 = vperm.slane %v247, 0
        %v249 = vmul.f32 %v241, %v248
        %v250 = vmul.f32 %v242, %v248
        %vm253 = vcmask 1046528
        %v254 = vrot.slane %v249, 1
        %v255 = vrot.slane %v250, 1
        %v256 = vsel %vm253, %v254, %v255
        %v258 = vadd.f32 %v246, %v256
        %v259 = vld [vmem:[%s2 + $0x4] sm:$0x1]
        %v260 = vperm.slane %v259, 0
        %v261 = vmul.f32 %v241, %v260
        %v262 = vmul.f32 %v242, %v260
        %vm265 = vcmask 1045504
        %v266 = vrot.slane %v261, 2
        %v267 = vrot.slane %v262, 2
        %v268 = vsel %vm265, %v266, %v267
        %v270 = vadd.f32 %v258, %v268
        %s271 = sadd.s32 %s219, 1
        %s272 = scalar_lea.vmem %s218, %s271
        %v273 = vld [vmem:[%s272] ss:$2 sm:$0xff]
        %s274 = scalar_lea.vmem %s272, 16
        %v275 = vld [vmem:[%s274] ss:$2 sm:$0x1]
        %v276 = vstv %s271
        %v277 = vadd.s32 %v276, %v229
        %v278 = vadd.s32 %v276, %v230
        %vm279 = vcmp.lt.s32.totalorder %v277, %v234
        %vm280 = vcmp.lt.s32.totalorder %v278, %v234
        %v281 = vsel %vm279, 1, 0
        %v282 = vsel %vm280, 1, 0
        %vm283 = vcmp.eq.s32.totalorder %v281, 1
        %vm284 = vcmp.eq.s32.totalorder %v282, 1
        %v285 = vsel %vm283, %v273, 0.0
        %v286 = vsel %vm284, %v275, 0.0
        %v287 = vld [vmem:[%s2 + $0x1] sm:$0x1]
        %v288 = vperm.slane %v287, 0
        %v289 = vmul.f32 %v285, %v288
        %v290 = vadd.f32 %v270, %v289
        %v291 = vld [vmem:[%s2 + $0x3] sm:$0x1]
        %v292 = vperm.slane %v291, 0
        %v293 = vmul.f32 %v285, %v292
        %v294 = vmul.f32 %v286, %v292
        %v297 = vrot.slane %v293, 1
        %v298 = vrot.slane %v294, 1
        %v299 = vsel %vm253, %v297, %v298
        %v301 = vadd.f32 %v290, %v299
        %v302 = vld [vmem:[%s3] sm:$0xff]
        %v303 = vld [vmem:[%s4] sm:$0x1]
        %v305 = vperm.slane %v303, 0
        %vm307 = vcmask 64512
        %v309 = vsel %vm307, %v301, 0
        %311 = vmatpush.msra.mxu0 0.0
        %312 = vmatpush.msra.mxu0 0.0
        %313 = vmatpush.msra.mxu0 0.0
        %314 = vmatpush.msra.mxu0 0.0
        %315 = vmatpush.msra.mxu0 0.0
        %316 = vmatpush.msra.mxu0 0.0
        %317 = vmatpush.msra.mxu0 0.0
        %318 = vmatpush.msra.mxu0 0.0
        %319 = vmatpush.msra.mxu0 0.0
        %320 = vmatpush.msra.mxu0 0.0
        %321 = vmatpush.msra.mxu0 0.0
        %322 = vmatpush.msra.mxu0 0.0
        %323 = vmatpush.msra.mxu0 0.0
        %324 = vmatpush.msra.mxu0 0.0
        %325 = vmatpush.msra.mxu0 0.0
        %326 = vmatpush.msra.mxu0 %v302
        %327 = vmatmul.f32.gmra.mxu0 %v309
        %v328 = vpop.f32.mrf.mxu0
        %v329 = vadd.f32 %v305, %v328
        %330 = vdwg.mxu0
        %331 = vst [vmem:[%s213] sm:$0xff] %v329
        %s332 = sand.u32 %s138, 1
        %s333 = scalar_lea.sflag [#allocation5], %s332
        %s334 = sand.u32 %s138, 1
        %s335 = smul.addr %s334, 8
        %s336 = scalar_lea.vmem [#allocation4], %s335
        // Predicated region
        $region37: #{tpu_custom_call.1} parent=35 // pred_check
          %p337 = pneg %p148
        $region38: #{tpu_custom_call.1} parent=35 // pred_check_branch
          %339 = sbr.rel (%p337) target = $region40
        $region39: #{tpu_custom_call.1} parent=35 // pred_region
          %341 = vsyncadd %s333, 0
          %s342 = smul.addr %s31, 3
          %s343 = sadd.s32 %s32, %s342
          %s344 = smul.addr %s343, 8
          %s345 = scalar_lea.hbm %s5, %s344
          %s347 = sshll.u32 %s336, 4
          %s348 = int_to_ptr.vmem [resolvable:$true] %s347
          %s349 = sshll.u32 %s345, 4
          %s350 = int_to_ptr.hbm [resolvable:$true] %s349
          %352 = dma.vmem_to_hbm [thread:$0]  %s348, 128, %s350, %s333
        $region40: #{tpu_custom_call.1} parent=35 // pred_fallthru
          _
      $region36: #{tpu_custom_call.1} parent=5 // pred_fallthru
        _
      %p353 = scmp.le.s32.totalorder 2, %s22
      // Predicated region
      $region41: #{tpu_custom_call.1} parent=5 // pred_check
        %p354 = pneg %p353
      $region42: #{tpu_custom_call.1} parent=5 // pred_check_branch
        %356 = sbr.rel (%p354) target = $region44
      $region43: #{tpu_custom_call.1} parent=5 // pred_region
        %s357 = ssub.s32 %s22, 2
        // Predicated region
        $region45: #{tpu_custom_call.1} parent=43 // pred_check
          %p358 = pneg %p154
        $region46: #{tpu_custom_call.1} parent=43 // pred_check_branch
          %360 = sbr.rel (%p358) target = $region48
        $region47: #{tpu_custom_call.1} parent=43 // pred_region
          %s361 = sand.u32 %s139, 1
          %s362 = scalar_lea.sflag [#allocation5], %s361
          %s363 = sand.u32 %s139, 1
          %s364 = smul.addr %s363, 8
          %s365 = scalar_lea.vmem [#allocation4], %s364
          %367 = dma.done %s362, 128
        $region48: #{tpu_custom_call.1} parent=43 // pred_fallthru
          _
      $region44: #{tpu_custom_call.1} parent=5 // pred_fallthru
        _
    $region6: #{tpu_custom_call.1} parent=1 // loop_footer
      %s26 = sadd.s32 1, %s22
    $region7: #{tpu_custom_call.1} parent=1 // loop_footer_branch
      %21 = sbr.rel target = $region3
    $region8: #{tpu_custom_call.1} parent=1 // loop_exit
      _
    %368 = vsyncpa [#allocation5], 1
    %s369 = scalar_lea.sflag [#allocation5], 1
    %370 = vsyncpa %s369, 1

</llo_original>
